<compile_context>
chip_gen: v6e
topology: v6e:2x2x1
jax: 0.10.0
libtpu: 0.0.40
codegen_flags: <defaults>
</compile_context>

<pallas_src>
import functools

import jax
import jax.numpy as jnp
from jax.experimental import pallas as pl
from jax.experimental.pallas import tpu as pltpu


def mlp_kernel(x_ref, w1_ref, b1_ref, w2_ref, b2_ref, feat_ref, scores_ref):
    # fc1 + ReLU.
    x = x_ref[...]
    fw = jnp.maximum(
        jnp.dot(x, w1_ref[...], preferred_element_type=jnp.float32)
        + b1_ref[...],
        0.0,
    )
    feat_ref[...] = fw.astype(feat_ref.dtype)
    # fc2 on the activated features.
    scores_ref[...] = (
        jnp.dot(fw, w2_ref[...], preferred_element_type=jnp.float32)
        + b2_ref[...]
    ).astype(scores_ref.dtype)


def _round_up(n, m):
    return ((n + m - 1) // m) * m


@functools.partial(jax.jit, static_argnames=("tm_max",))
def simple_classification_forward(x, w1, b1, w2, b2, *, tm_max=4096):
    """x: (B, input_dim); w1: (input_dim, hidden); b1: (hidden,);
       w2: (hidden, num_classes); b2: (num_classes,).
       Weights are stored TRANSPOSED vs. PyTorch nn.Linear (y = x @ W + b).
       Returns (scores, features), matching the PyTorch module."""
    B, input_dim = x.shape
    # Explicit orientation checks (weights must be pre-transposed vs PyTorch).
    assert w1.shape[0] == input_dim, "w1 must be (input_dim, hidden)"
    hidden = w1.shape[1]
    assert b1.shape == (hidden,), "b1 must be (hidden,)"
    assert w2.shape[0] == hidden, "w2 must be (hidden, num_classes)"
    num_classes = w2.shape[1]
    assert b2.shape == (num_classes,), "b2 must be (num_classes,)"

    f32 = jnp.float32
    w1f = w1.astype(f32)
    b1f = b1.reshape(1, hidden).astype(f32)
    w2f = w2.astype(f32)
    b2f = b2.reshape(1, num_classes).astype(f32)

    # Row tile: multiple of 8 (sublanes), as large as useful, capped for VMEM.
    tm = min(tm_max, _round_up(B, 8))
    # Keep >= 2 grid steps when the batch is big enough so the "parallel"
    # batch axis can feed both TensorCores on v7x (no-op for tiny batches).
    if tm >= 16 and _round_up(B, tm) // tm < 2:
        tm = _round_up((tm + 1) // 2, 8)
    b_pad = _round_up(B, tm)

    xp = x.astype(f32)
    if b_pad != B:
        xp = jnp.pad(xp, ((0, b_pad - B), (0, 0)))

    # Corrected VMEM accounting: each (tm, d) f32 block is lane-padded to 128
    # lanes in VMEM; x + features + scores are each double-buffered.
    per_step_vmem = 2 * 3 * tm * 128 * 4
    param_vmem = 2 * (_round_up(input_dim, 8) + 8 + _round_up(hidden, 8) + 8) * 128 * 4
    vmem_limit = int(min(48 << 20,
                         max(per_step_vmem + param_vmem + (4 << 20), 16 << 20)))

    bytes_accessed = (
        b_pad * (input_dim + hidden + num_classes) * 4
        + (w1f.size + b1f.size + w2f.size + b2f.size) * 4
    )
    cost = pl.CostEstimate(
        flops=2 * b_pad * (input_dim * hidden + hidden * num_classes),
        transcendentals=0,
        bytes_accessed=int(bytes_accessed),
    )

    features, scores = pl.pallas_call(
        mlp_kernel,
        out_shape=(
            jax.ShapeDtypeStruct((b_pad, hidden), f32),
            jax.ShapeDtypeStruct((b_pad, num_classes), f32),
        ),
        grid=(b_pad // tm,),
        in_specs=[
            pl.BlockSpec((tm, input_dim), lambda i: (i, 0)),        # x (streamed)
            pl.BlockSpec((input_dim, hidden), lambda i: (0, 0)),    # w1 (resident)
            pl.BlockSpec((1, hidden), lambda i: (0, 0)),            # b1 (resident)
            pl.BlockSpec((hidden, num_classes), lambda i: (0, 0)),  # w2 (resident)
            pl.BlockSpec((1, num_classes), lambda i: (0, 0)),       # b2 (resident)
        ],
        out_specs=(
            pl.BlockSpec((tm, hidden), lambda i: (i, 0)),           # features
            pl.BlockSpec((tm, num_classes), lambda i: (i, 0)),      # scores
        ),
        compiler_params=pltpu.CompilerParams(
            dimension_semantics=("parallel",),
            vmem_limit_bytes=vmem_limit,
        ),
        cost_estimate=cost,
    )(xp, w1f, b1f, w2f, b2f)

    if b_pad != B:
        features = features[:B]
        scores = scores[:B]
    return scores, features


def init_params(key, input_dim=10, hidden=20, num_classes=5):
    # Deterministic synthetic init (PyTorch-style uniform fan-in bound).
    k1, k2, k3, k4 = jax.random.split(key, 4)
    bound1 = 1.0 / jnp.sqrt(input_dim)
    bound2 = 1.0 / jnp.sqrt(hidden)
    w1 = jax.random.uniform(k1, (input_dim, hidden), jnp.float32, -bound1, bound1)
    b1 = jax.random.uniform(k2, (hidden,), jnp.float32, -bound1, bound1)
    w2 = jax.random.uniform(k3, (hidden, num_classes), jnp.float32, -bound2, bound2)
    b2 = jax.random.uniform(k4, (num_classes,), jnp.float32, -bound2, bound2)
    return w1, b1, w2, b2


if __name__ == "__main__":
    key = jax.random.PRNGKey(0)
    kx, kp, kx2, kx3 = jax.random.split(key, 4)

    B, input_dim, hidden, num_classes = 8, 10, 20, 5
    x = jax.random.normal(kx, (B, input_dim), jnp.float32)
    w1, b1, w2, b2 = init_params(kp, input_dim, hidden, num_classes)

    def ref_forward(xin):
        f = jnp.maximum(xin @ w1 + b1[None, :], 0.0)
        return f @ w2 + b2[None, :], f

    # Small-batch path (single grid step).
    scores, features = simple_classification_forward(x, w1, b1, w2, b2)
    jax.block_until_ready((scores, features))
    scores_ref, feat_ref = ref_forward(x)
    assert scores.shape == (B, num_classes) and features.shape == (B, hidden)
    assert jnp.allclose(features, feat_ref, atol=1e-5, rtol=1e-5)
    assert jnp.allclose(scores, scores_ref, atol=1e-5, rtol=1e-5)

    # Multi-tile grid path with a small explicit tile (B padded to 128).
    B2 = 100
    x2 = jax.random.normal(kx2, (B2, input_dim), jnp.float32)
    scores2, features2 = simple_classification_forward(
        x2, w1, b1, w2, b2, tm_max=32)
    jax.block_until_ready((scores2, features2))
    scores2_ref, feat2_ref = ref_forward(x2)
    assert scores2.shape == (B2, num_classes) and features2.shape == (B2, hidden)
    assert jnp.allclose(features2, feat2_ref, atol=1e-5, rtol=1e-5)
    assert jnp.allclose(scores2, scores2_ref, atol=1e-5, rtol=1e-5)

    # Default-tm path at a larger batch (exercises the >=2-grid-step split).
    B3 = 1000
    x3 = jax.random.normal(kx3, (B3, input_dim), jnp.float32)
    scores3, features3 = simple_classification_forward(x3, w1, b1, w2, b2)
    jax.block_until_ready((scores3, features3))
    scores3_ref, feat3_ref = ref_forward(x3)
    assert scores3.shape == (B3, num_classes) and features3.shape == (B3, hidden)
    assert jnp.allclose(features3, feat3_ref, atol=1e-5, rtol=1e-5)
    assert jnp.allclose(scores3, scores3_ref, atol=1e-5, rtol=1e-5)

    print("KERNEL_OK")
</pallas_src>

<mosaic_0001>
module attributes {stable_mosaic.version = 11 : i64} {
  func.func @mlp_kernel(%arg0: i32, %arg1: memref<8x10xf32, #tpu.memory_space<vmem>>, %arg2: memref<10x20xf32, #tpu.memory_space<vmem>>, %arg3: memref<1x20xf32, #tpu.memory_space<vmem>>, %arg4: memref<20x5xf32, #tpu.memory_space<vmem>>, %arg5: memref<1x5xf32, #tpu.memory_space<vmem>>, %arg6: memref<8x20xf32, #tpu.memory_space<vmem>>, %arg7: memref<8x5xf32, #tpu.memory_space<vmem>>) attributes {dimension_semantics = [#tpu.dimension_semantics<parallel>], iteration_bounds = array<i64: 1>, scalar_prefetch = 0 : i64, scratch_operands = 0 : i64, tpu.core_type = #tpu.core_type<tc>, window_params = [{transform_indices = @transform_0, window_bounds = array<i64: 8, 10>}, {pipeline_mode = #tpu.pipeline_mode<synchronous>, transform_indices = @transform_1, window_bounds = array<i64: 10, 20>}, {pipeline_mode = #tpu.pipeline_mode<synchronous>, transform_indices = @transform_2, window_bounds = array<i64: 1, 20>}, {pipeline_mode = #tpu.pipeline_mode<synchronous>, transform_indices = @transform_3, window_bounds = array<i64: 20, 5>}, {pipeline_mode = #tpu.pipeline_mode<synchronous>, transform_indices = @transform_4, window_bounds = array<i64: 1, 5>}, {transform_indices = @transform_5, window_bounds = array<i64: 8, 20>}, {transform_indices = @transform_6, window_bounds = array<i64: 8, 5>}]} {
    %c0 = arith.constant 0 : index
    %c0_0 = arith.constant 0 : index
    %0 = vector.load %arg1[%c0, %c0_0] : memref<8x10xf32, #tpu.memory_space<vmem>>, vector<8x10xf32>
    %c0_1 = arith.constant 0 : index
    %c0_2 = arith.constant 0 : index
    %1 = vector.load %arg2[%c0_1, %c0_2] : memref<10x20xf32, #tpu.memory_space<vmem>>, vector<10x20xf32>
    %cst = arith.constant dense<0.000000e+00> : vector<8x20xf32>
    %2 = tpu.matmul %0, %1, %cst {dimension_numbers = #tpu.dot_dimension_numbers<[1], [0], [0], [1], [0, 0, 1, 1], [], []>} : vector<8x10xf32>, vector<10x20xf32>, vector<8x20xf32> -> vector<8x20xf32>
    %c0_3 = arith.constant 0 : index
    %c0_4 = arith.constant 0 : index
    %3 = vector.load %arg3[%c0_3, %c0_4] : memref<1x20xf32, #tpu.memory_space<vmem>>, vector<1x20xf32>
    %4 = vector.broadcast %3 : vector<1x20xf32> to vector<8x20xf32>
    %5 = arith.addf %2, %4 : vector<8x20xf32>
    %cst_5 = arith.constant 0.000000e+00 : f32
    %6 = vector.broadcast %cst_5 : f32 to vector<8x20xf32>
    %7 = arith.maximumf %5, %6 : vector<8x20xf32>
    %c0_6 = arith.constant 0 : index
    %c0_7 = arith.constant 0 : index
    %8 = vector.load %arg6[%c0_6, %c0_7] : memref<8x20xf32, #tpu.memory_space<vmem>>, vector<8x20xf32>
    tpu.vector_store %arg6[%c0_6, %c0_7], %7 {strides = array<i32>} : memref<8x20xf32, #tpu.memory_space<vmem>>, vector<8x20xf32>,
    %c0_8 = arith.constant 0 : index
    %c0_9 = arith.constant 0 : index
    %9 = vector.load %arg4[%c0_8, %c0_9] : memref<20x5xf32, #tpu.memory_space<vmem>>, vector<20x5xf32>
    %cst_10 = arith.constant dense<0.000000e+00> : vector<8x5xf32>
    %10 = tpu.matmul %7, %9, %cst_10 {dimension_numbers = #tpu.dot_dimension_numbers<[1], [0], [0], [1], [0, 0, 1, 1], [], []>} : vector<8x20xf32>, vector<20x5xf32>, vector<8x5xf32> -> vector<8x5xf32>
    %c0_11 = arith.constant 0 : index
    %c0_12 = arith.constant 0 : index
    %11 = vector.load %arg5[%c0_11, %c0_12] : memref<1x5xf32, #tpu.memory_space<vmem>>, vector<1x5xf32>
    %12 = vector.broadcast %11 : vector<1x5xf32> to vector<8x5xf32>
    %13 = arith.addf %10, %12 : vector<8x5xf32>
    %c0_13 = arith.constant 0 : index
    %c0_14 = arith.constant 0 : index
    %14 = vector.load %arg7[%c0_13, %c0_14] : memref<8x5xf32, #tpu.memory_space<vmem>>, vector<8x5xf32>
    tpu.vector_store %arg7[%c0_13, %c0_14], %13 {strides = array<i32>} : memref<8x5xf32, #tpu.memory_space<vmem>>, vector<8x5xf32>,
    return
  }
  func.func @transform_0(%arg0: i32) -> (i32, i32) {
    %c0_i32 = arith.constant 0 : i32
    %c0_i32_0 = arith.constant 0 : i32
    return %arg0, %c0_i32 : i32, i32
  }
  func.func @transform_1(%arg0: i32) -> (i32, i32) {
    %c0_i32 = arith.constant 0 : i32
    %c0_i32_0 = arith.constant 0 : i32
    %c0_i32_1 = arith.constant 0 : i32
    return %c0_i32, %c0_i32_0 : i32, i32
  }
  func.func @transform_2(%arg0: i32) -> (i32, i32) {
    %c0_i32 = arith.constant 0 : i32
    %c0_i32_0 = arith.constant 0 : i32
    %c0_i32_1 = arith.constant 0 : i32
    return %c0_i32, %c0_i32_0 : i32, i32
  }
  func.func @transform_3(%arg0: i32) -> (i32, i32) {
    %c0_i32 = arith.constant 0 : i32
    %c0_i32_0 = arith.constant 0 : i32
    %c0_i32_1 = arith.constant 0 : i32
    return %c0_i32, %c0_i32_0 : i32, i32
  }
  func.func @transform_4(%arg0: i32) -> (i32, i32) {
    %c0_i32 = arith.constant 0 : i32
    %c0_i32_0 = arith.constant 0 : i32
    %c0_i32_1 = arith.constant 0 : i32
    return %c0_i32, %c0_i32_0 : i32, i32
  }
  func.func @transform_5(%arg0: i32) -> (i32, i32) {
    %c0_i32 = arith.constant 0 : i32
    %c0_i32_0 = arith.constant 0 : i32
    return %arg0, %c0_i32 : i32, i32
  }
  func.func @transform_6(%arg0: i32) -> (i32, i32) {
    %c0_i32 = arith.constant 0 : i32
    %c0_i32_0 = arith.constant 0 : i32
    return %arg0, %c0_i32 : i32, i32
  }
}

</mosaic_0001>

<llo_original>
// kernel: simple_classification_forward.1
$region0: #{simple_classification_forward.1}
  #allocation0 [shape = 'u32[]', space=smem, size = 0x4, offset = 0x4, fixed_abs, tag = 'smem constant byte address 0x4 - core index']
  #allocation1 [shape = 'u32[144,128]{1,0:T(1,128)}', space=vmem, size = 0x12000, scoped, tag = 'internal scratch']
  %s0 = inlined_call_operand.vmem [shape: f32[8,10], index: 0, kind: input, shape index: {}]
  %s1 = inlined_call_operand.vmem [shape: f32[10,20], index: 1, kind: input, shape index: {}]
  %s2 = inlined_call_operand.vmem [shape: f32[1,20], index: 2, kind: input, shape index: {}]
  %s3 = inlined_call_operand.vmem [shape: f32[20,5], index: 3, kind: input, shape index: {}]
  %s4 = inlined_call_operand.vmem [shape: f32[1,5], index: 4, kind: input, shape index: {}]
  %s5 = inlined_call_operand.hbm [shape: f32[8,20], index: 5, kind: output, shape index: {0}]
  %s6 = inlined_call_operand.hbm [shape: f32[8,5], index: 6, kind: output, shape index: {1}]
  %7 = xla_tuple %s5, %s6
  %s8 = sld [smem:[#allocation0]]
  $region38: #{simple_classification_forward.1} parent=0
    _
  %s10 = ssub.s32 1, %s8
  %s11 = scalar_select 0, %s10, %s8
  $region1: #{simple_classification_forward.1} parent=0
    #allocation2 [shape = 'u8[4096]{0}', space=vmem, size = 0x1000, scoped, tag = 'output window, operand 0, single buffered']
    #allocation3 [shape = 's32[1]{0}', space=sflag, size = 0x4, scoped, tag = 'scoped memory for simple_classification_forward.1']
    #allocation4 [shape = 'u8[4096]{0}', space=vmem, size = 0x1000, scoped, tag = 'output window, operand 1, single buffered']
    #allocation5 [shape = 's32[1]{0}', space=sflag, size = 0x4, scoped, tag = 'scoped memory for simple_classification_forward.1']
    %12 = vsyncpa [#allocation3], 0
    %13 = vsyncpa [#allocation5], 0
    // Predicated region
    $region2: #{simple_classification_forward.1} parent=1 // pred_check
      _
    $region3: #{simple_classification_forward.1} parent=1 // pred_check_branch
      %15 = sbr.rel (0) target = $region5
    $region4: #{simple_classification_forward.1} parent=1 // pred_region
      _
    $region5: #{simple_classification_forward.1} parent=1 // pred_fallthru
      _
    // Predicated region
    $region6: #{simple_classification_forward.1} parent=1 // pred_check
      _
    $region7: #{simple_classification_forward.1} parent=1 // pred_check_branch
      %17 = sbr.rel (0) target = $region9
    $region8: #{simple_classification_forward.1} parent=1 // pred_region
      _
    $region9: #{simple_classification_forward.1} parent=1 // pred_fallthru
      _
    // Predicated region
    $region10: #{simple_classification_forward.1} parent=1 // pred_check
      _
    $region11: #{simple_classification_forward.1} parent=1 // pred_check_branch
      %19 = sbr.rel (0) target = $region13
    $region12: #{simple_classification_forward.1} parent=1 // pred_region
      _
    $region13: #{simple_classification_forward.1} parent=1 // pred_fallthru
      _
    // Predicated region
    $region14: #{simple_classification_forward.1} parent=1 // pred_check
      _
    $region15: #{simple_classification_forward.1} parent=1 // pred_check_branch
      %21 = sbr.rel (0) target = $region17
    $region16: #{simple_classification_forward.1} parent=1 // pred_region
      _
    $region17: #{simple_classification_forward.1} parent=1 // pred_fallthru
      _
    // Predicated region
    $region18: #{simple_classification_forward.1} parent=1 // pred_check
      _
    $region19: #{simple_classification_forward.1} parent=1 // pred_check_branch
      %23 = sbr.rel (0) target = $region21
    $region20: #{simple_classification_forward.1} parent=1 // pred_region
      _
    $region21: #{simple_classification_forward.1} parent=1 // pred_fallthru
      _
    %v24 = vld [vmem:[%s0] sm:$0xff]
    %v25 = vld [vmem:[%s1] sm:$0xff]
    %v26 = vld [vmem:[%s1 + $0x8] sm:$0x3]
    %v27 = vld [vmem:[%s2] sm:$0x1]
    %v29 = vlaneseq
    %v30 = vshrl.u32 %v29, 7
    %v31 = vsub.s32 0, %v30
    %v32 = vrot.slane %v27, %v31
    %vm34 = vcmask 80896
    %v36 = vsel %vm34, %v24, 0
    %vm38 = vcmask 1041408
    %v40 = vsel %vm38, %v26, 0
    %42 = vmatprep.subr.mxu0 0.0
    %43 = vmatpush1.msra.mxu0 0.0
    %44 = vmatprep.subr.mxu0 0.0
    %45 = vmatpush1.msra.mxu0 0.0
    %46 = vmatprep.subr.mxu0 0.0
    %47 = vmatpush1.msra.mxu0 0.0
    %48 = vmatprep.subr.mxu0 0.0
    %49 = vmatpush1.msra.mxu0 0.0
    %50 = vmatprep.subr.mxu0 0.0
    %51 = vmatpush1.msra.mxu0 0.0
    %52 = vmatprep.subr.mxu0 0.0
    %53 = vmatpush1.msra.mxu0 0.0
    %54 = vmatprep.subr.mxu0 0.0
    %55 = vmatpush1.msra.mxu0 0.0
    %56 = vmatprep.subr.mxu0 0.0
    %57 = vmatpush1.msra.mxu0 0.0
    %58 = vmatprep.subr.mxu0 0.0
    %59 = vmatpush1.msra.mxu0 0.0
    %60 = vmatprep.subr.mxu0 0.0
    %61 = vmatpush1.msra.mxu0 0.0
    %62 = vmatprep.subr.mxu0 0.0
    %63 = vmatpush1.msra.mxu0 0.0
    %64 = vmatprep.subr.mxu0 0.0
    %65 = vmatpush1.msra.mxu0 0.0
    %66 = vmatprep.subr.mxu0 0.0
    %67 = vmatpush1.msra.mxu0 0.0
    %68 = vmatprep.subr.mxu0 0.0
    %69 = vmatpush1.msra.mxu0 0.0
    %70 = vmatprep.subr.mxu0 0.0
    %71 = vmatpush1.msra.mxu0 %v40
    %72 = vmatprep.subr.mxu0 0.0
    %73 = vmatpush1.msra.mxu0 %v25
    %74 = vmatprep.subr.mxu0 0.0
    %75 = vmatpush2.msra.mxu0 0.0
    %76 = vmatprep.subr.mxu0 0.0
    %77 = vmatpush2.msra.mxu0 0.0
    %78 = vmatprep.subr.mxu0 0.0
    %79 = vmatpush2.msra.mxu0 0.0
    %80 = vmatprep.subr.mxu0 0.0
    %81 = vmatpush2.msra.mxu0 0.0
    %82 = vmatprep.subr.mxu0 0.0
    %83 = vmatpush2.msra.mxu0 0.0
    %84 = vmatprep.subr.mxu0 0.0
    %85 = vmatpush2.msra.mxu0 0.0
    %86 = vmatprep.subr.mxu0 0.0
    %87 = vmatpush2.msra.mxu0 0.0
    %88 = vmatprep.subr.mxu0 0.0
    %89 = vmatpush2.msra.mxu0 0.0
    %90 = vmatprep.subr.mxu0 0.0
    %91 = vmatpush2.msra.mxu0 0.0
    %92 = vmatprep.subr.mxu0 0.0
    %93 = vmatpush2.msra.mxu0 0.0
    %94 = vmatprep.subr.mxu0 0.0
    %95 = vmatpush2.msra.mxu0 0.0
    %96 = vmatprep.subr.mxu0 0.0
    %97 = vmatpush2.msra.mxu0 0.0
    %98 = vmatprep.subr.mxu0 0.0
    %99 = vmatpush2.msra.mxu0 0.0
    %100 = vmatprep.subr.mxu0 0.0
    %101 = vmatpush2.msra.mxu0 0.0
    %102 = vmatprep.subr.mxu0 0.0
    %103 = vmatpush2.msra.mxu0 0.0
    %104 = vmatprep.subr.mxu0 0.0
    %105 = vmatpush2.msra.mxu0 0.0
    %106 = vmatprep.mubr.f32.mxu0 0.0
    %107 = vmatmul.mubr.f32.gmra.mxu0 %v36
    %v108 = vpop.f32.mrf.mxu0
    %v109 = vadd.f32 %v32, %v108
    %v110 = vpop.f32.mrf.mxu0
    %111 = vdwg.mxu0
    %v112 = vmax.f32 %v109, 0.0
    %vm113 = vcmask 162816
    %114 = vst.msk [vmem:[#allocation2] sm:$0xff] %vm113, %v112
    %v115 = vld [vmem:[%s3] sm:$0xff]
    %v116 = vld [vmem:[%s3 + $0x8] sm:$0xff]
    %v117 = vld [vmem:[%s3 + $0x10] sm:$0xf]
    %v118 = vld [vmem:[%s4] sm:$0x1]
    %v120 = vlaneseq
    %v121 = vshrl.u32 %v120, 7
    %v122 = vsub.s32 0, %v121
    %v123 = vrot.slane %v118, %v122
    %v126 = vsel %vm113, %v112, 0
    %vm128 = vcmask 1043456
    %v130 = vsel %vm128, %v117, 0
    %132 = vmatprep.subr.mxu0 0.0
    %133 = vmatpush1.msra.mxu0 0.0
    %134 = vmatprep.subr.mxu0 0.0
    %135 = vmatpush1.msra.mxu0 0.0
    %136 = vmatprep.subr.mxu0 0.0
    %137 = vmatpush1.msra.mxu0 0.0
    %138 = vmatprep.subr.mxu0 0.0
    %139 = vmatpush1.msra.mxu0 0.0
    %140 = vmatprep.subr.mxu0 0.0
    %141 = vmatpush1.msra.mxu0 0.0
    %142 = vmatprep.subr.mxu0 0.0
    %143 = vmatpush1.msra.mxu0 0.0
    %144 = vmatprep.subr.mxu0 0.0
    %145 = vmatpush1.msra.mxu0 0.0
    %146 = vmatprep.subr.mxu0 0.0
    %147 = vmatpush1.msra.mxu0 0.0
    %148 = vmatprep.subr.mxu0 0.0
    %149 = vmatpush1.msra.mxu0 0.0
    %150 = vmatprep.subr.mxu0 0.0
    %151 = vmatpush1.msra.mxu0 0.0
    %152 = vmatprep.subr.mxu0 0.0
    %153 = vmatpush1.msra.mxu0 0.0
    %154 = vmatprep.subr.mxu0 0.0
    %155 = vmatpush1.msra.mxu0 0.0
    %156 = vmatprep.subr.mxu0 0.0
    %157 = vmatpush1.msra.mxu0 0.0
    %158 = vmatprep.subr.mxu0 0.0
    %159 = vmatpush1.msra.mxu0 %v130
    %160 = vmatprep.subr.mxu0 0.0
    %161 = vmatpush1.msra.mxu0 %v116
    %162 = vmatprep.subr.mxu0 0.0
    %163 = vmatpush1.msra.mxu0 %v115
    %164 = vmatprep.subr.mxu0 0.0
    %165 = vmatpush2.msra.mxu0 0.0
    %166 = vmatprep.subr.mxu0 0.0
    %167 = vmatpush2.msra.mxu0 0.0
    %168 = vmatprep.subr.mxu0 0.0
    %169 = vmatpush2.msra.mxu0 0.0
    %170 = vmatprep.subr.mxu0 0.0
    %171 = vmatpush2.msra.mxu0 0.0
    %172 = vmatprep.subr.mxu0 0.0
    %173 = vmatpush2.msra.mxu0 0.0
    %174 = vmatprep.subr.mxu0 0.0
    %175 = vmatpush2.msra.mxu0 0.0
    %176 = vmatprep.subr.mxu0 0.0
    %177 = vmatpush2.msra.mxu0 0.0
    %178 = vmatprep.subr.mxu0 0.0
    %179 = vmatpush2.msra.mxu0 0.0
    %180 = vmatprep.subr.mxu0 0.0
    %181 = vmatpush2.msra.mxu0 0.0
    %182 = vmatprep.subr.mxu0 0.0
    %183 = vmatpush2.msra.mxu0 0.0
    %184 = vmatprep.subr.mxu0 0.0
    %185 = vmatpush2.msra.mxu0 0.0
    %186 = vmatprep.subr.mxu0 0.0
    %187 = vmatpush2.msra.mxu0 0.0
    %188 = vmatprep.subr.mxu0 0.0
    %189 = vmatpush2.msra.mxu0 0.0
    %190 = vmatprep.subr.mxu0 0.0
    %191 = vmatpush2.msra.mxu0 0.0
    %192 = vmatprep.subr.mxu0 0.0
    %193 = vmatpush2.msra.mxu0 0.0
    %194 = vmatprep.subr.mxu0 0.0
    %195 = vmatpush2.msra.mxu0 0.0
    %196 = vmatprep.mubr.f32.mxu0 0.0
    %197 = vmatmul.mubr.f32.gmra.mxu0 %v126
    %v198 = vpop.f32.mrf.mxu0
    %v199 = vadd.f32 %v123, %v198
    %v200 = vpop.f32.mrf.mxu0
    %201 = vdwg.mxu0
    %vm202 = vcmask 39936
    %203 = vst.msk [vmem:[#allocation4] sm:$0xff] %vm202, %v199
    // Predicated region
    $region22: #{simple_classification_forward.1} parent=1 // pred_check
      _
    $region23: #{simple_classification_forward.1} parent=1 // pred_check_branch
      %205 = sbr.rel (0) target = $region25
    $region24: #{simple_classification_forward.1} parent=1 // pred_region
      %s207 = ssub.s32 128, 128
      %208 = vsyncadd [#allocation3], %s207
      %s210 = sshll.u32 [#allocation2], 4
      %s211 = int_to_ptr.vmem [resolvable:$true] %s210
      %213 = dma.vmem_to_hbm [thread:$0]  %s211, 128, %s5, [#allocation3]
    $region25: #{simple_classification_forward.1} parent=1 // pred_fallthru
      _
    // Predicated region
    $region26: #{simple_classification_forward.1} parent=1 // pred_check
      _
    $region27: #{simple_classification_forward.1} parent=1 // pred_check_branch
      %215 = sbr.rel (0) target = $region29
    $region28: #{simple_classification_forward.1} parent=1 // pred_region
      %s217 = ssub.s32 128, 128
      %218 = vsyncadd [#allocation5], %s217
      %s220 = sshll.u32 [#allocation4], 4
      %s221 = int_to_ptr.vmem [resolvable:$true] %s220
      %223 = dma.vmem_to_hbm [thread:$0]  %s221, 128, %s6, [#allocation5]
    $region29: #{simple_classification_forward.1} parent=1 // pred_fallthru
      _
    // Predicated region
    $region30: #{simple_classification_forward.1} parent=1 // pred_check
      _
    $region31: #{simple_classification_forward.1} parent=1 // pred_check_branch
      %225 = sbr.rel (0) target = $region33
    $region32: #{simple_classification_forward.1} parent=1 // pred_region
      %226 = dma.done [#allocation3], 128
    $region33: #{simple_classification_forward.1} parent=1 // pred_fallthru
      _
    // Predicated region
    $region34: #{simple_classification_forward.1} parent=1 // pred_check
      _
    $region35: #{simple_classification_forward.1} parent=1 // pred_check_branch
      %228 = sbr.rel (0) target = $region37
    $region36: #{simple_classification_forward.1} parent=1 // pred_region
      %229 = dma.done [#allocation5], 128
    $region37: #{simple_classification_forward.1} parent=1 // pred_fallthru
      _
    %230 = vsyncpa [#allocation3], 1
    %231 = vsyncpa [#allocation5], 1

</llo_original>
